<compile_context>
chip_gen: v5e
topology: v5e:2x2
jax: 0.10.0
libtpu: 0.0.40
codegen_flags: <defaults>
</compile_context>

<pallas_src>
import functools

import jax
import jax.numpy as jnp
from jax.experimental import pallas as pl
from jax.experimental.pallas import tpu as pltpu


def _round_up(n, m):
    return ((n + m - 1) // m) * m


def smnn_kernel(x_ref, w_ref, b_ref, o_ref):
    # x: (tb, K), w: (K, N), b: (1, N), o: (tb, N)
    y = jnp.dot(x_ref[...], w_ref[...], preferred_element_type=jnp.float32)
    y = y + b_ref[...]                       # broadcast bias over batch rows
    o_ref[...] = jnp.maximum(y, 0.0).astype(o_ref.dtype)


@functools.partial(jax.jit,
                   static_argnames=("block_b", "use_bf16", "small_batch"))
def smnn_forward(x, w, b, *, block_b=1024, use_bf16=False, small_batch=256):
    """ReLU(x @ w + b).

    x: (B, D_in) float32 (or bf16), w: (D_in, D_out), b: (D_out,) or (1, D_out).
    Returns (B, D_out) float32.
    """
    B, D_in = x.shape
    D_in_w, D_out = w.shape
    assert D_in == D_in_w

    b2 = b.reshape(1, D_out).astype(jnp.float32)

    # ---- small-batch fast path: kernel launch not worth it ------------------
    if B <= small_batch:
        y = jnp.dot(x.astype(jnp.float32), w.astype(jnp.float32),
                    preferred_element_type=jnp.float32)
        return jnp.maximum(y + b2, 0.0)

    # ---- optional bf16 operands for the MXU (f32 accumulation) --------------
    if use_bf16:
        x = x.astype(jnp.bfloat16)
        w = w.astype(jnp.bfloat16)

    # ---- batch tile: multiple of 8, capped; ragged last block is masked -----
    tb = min(block_b, _round_up(B, 8))
    grid = (pl.cdiv(B, tb),)

    cost = pl.CostEstimate(
        flops=2 * B * D_in * D_out,
        transcendentals=0,
        bytes_accessed=(x.size * x.dtype.itemsize
                        + w.size * w.dtype.itemsize
                        + b2.size * b2.dtype.itemsize
                        + B * D_out * 4),
    )

    return pl.pallas_call(
        smnn_kernel,
        out_shape=jax.ShapeDtypeStruct((B, D_out), jnp.float32),
        grid=grid,
        in_specs=[
            pl.BlockSpec((tb, D_in), lambda i: (i, 0)),     # x tile per step
            pl.BlockSpec((D_in, D_out), lambda i: (0, 0)),  # weight resident
            pl.BlockSpec((1, D_out), lambda i: (0, 0)),     # bias resident
        ],
        out_specs=pl.BlockSpec((tb, D_out), lambda i: (i, 0)),
        compiler_params=pltpu.CompilerParams(
            dimension_semantics=("parallel",),
        ),
        cost_estimate=cost,
    )(x, w, b2)


def prepare_params(w, b, *, use_bf16=False):
    """One-off parameter prep (cast / reshape) hoisted out of the per-call path."""
    dtype = jnp.bfloat16 if use_bf16 else jnp.float32
    return w.astype(dtype), b.reshape(1, -1).astype(jnp.float32)


def init_smnn_params(key, input_dim=200, output_dim=250, dtype=jnp.float32):
    """Deterministic init mirroring nn.Linear's default (uniform +/- 1/sqrt(fan_in))."""
    k_w, k_b = jax.random.split(key)
    bound = 1.0 / jnp.sqrt(jnp.asarray(input_dim, dtype))
    # Stored pre-transposed: (input_dim, output_dim).
    w = jax.random.uniform(k_w, (input_dim, output_dim), dtype, -bound, bound)
    b = jax.random.uniform(k_b, (output_dim,), dtype, -bound, bound)
    return w, b


if __name__ == "__main__":
    key = jax.random.PRNGKey(0)
    k_x, k_p = jax.random.split(key)

    input_dim, output_dim, batch = 200, 250, 8
    x = jax.random.normal(k_x, (batch, input_dim), jnp.float32)
    w, b = init_smnn_params(k_p, input_dim, output_dim)

    # Small batch, force the Pallas path (fast path disabled).
    out = smnn_forward(x, w, b, small_batch=0)
    jax.block_until_ready(out)
    ref = jnp.maximum(x @ w + b[None, :], 0.0)
    assert out.shape == (batch, output_dim)
    assert jnp.allclose(out, ref, atol=1e-5, rtol=1e-5)

    # Larger batch that is not a multiple of the tile: exercises the multi-step
    # grid and the masked ragged last block.
    x_big = jax.random.normal(k_x, (1040, input_dim), jnp.float32)
    out_big = smnn_forward(x_big, w, b)
    jax.block_until_ready(out_big)
    ref_big = jnp.maximum(x_big @ w + b[None, :], 0.0)
    assert out_big.shape == (1040, output_dim)
    assert jnp.allclose(out_big, ref_big, atol=1e-4, rtol=1e-5)

    # bf16-operand path (opt-in): looser tolerance, f32 accumulation/output.
    out_bf16 = smnn_forward(x_big, w, b, use_bf16=True)
    jax.block_until_ready(out_bf16)
    assert jnp.allclose(out_bf16, ref_big, atol=5e-2, rtol=5e-2)

    print("KERNEL_OK")
</pallas_src>

<mosaic_0001>
module attributes {stable_mosaic.version = 11 : i64} {
  func.func @smnn_kernel(%arg0: i32, %arg1: memref<8x200xf32, #tpu.memory_space<vmem>>, %arg2: memref<200x250xf32, #tpu.memory_space<vmem>>, %arg3: memref<1x250xf32, #tpu.memory_space<vmem>>, %arg4: memref<8x250xf32, #tpu.memory_space<vmem>>) attributes {dimension_semantics = [#tpu.dimension_semantics<parallel>], iteration_bounds = array<i64: 1>, scalar_prefetch = 0 : i64, scratch_operands = 0 : i64, tpu.core_type = #tpu.core_type<tc>, window_params = [{transform_indices = @transform_0, window_bounds = array<i64: 8, 200>}, {pipeline_mode = #tpu.pipeline_mode<synchronous>, transform_indices = @transform_1, window_bounds = array<i64: 200, 250>}, {pipeline_mode = #tpu.pipeline_mode<synchronous>, transform_indices = @transform_2, window_bounds = array<i64: 1, 250>}, {transform_indices = @transform_3, window_bounds = array<i64: 8, 250>}]} {
    %c0 = arith.constant 0 : index
    %c0_0 = arith.constant 0 : index
    %0 = vector.load %arg1[%c0, %c0_0] : memref<8x200xf32, #tpu.memory_space<vmem>>, vector<8x200xf32>
    %c0_1 = arith.constant 0 : index
    %c0_2 = arith.constant 0 : index
    %1 = vector.load %arg2[%c0_1, %c0_2] : memref<200x250xf32, #tpu.memory_space<vmem>>, vector<200x250xf32>
    %cst = arith.constant dense<0.000000e+00> : vector<8x250xf32>
    %2 = tpu.matmul %0, %1, %cst {dimension_numbers = #tpu.dot_dimension_numbers<[1], [0], [0], [1], [0, 0, 1, 1], [], []>} : vector<8x200xf32>, vector<200x250xf32>, vector<8x250xf32> -> vector<8x250xf32>
    %c0_3 = arith.constant 0 : index
    %c0_4 = arith.constant 0 : index
    %3 = vector.load %arg3[%c0_3, %c0_4] : memref<1x250xf32, #tpu.memory_space<vmem>>, vector<1x250xf32>
    %4 = vector.broadcast %3 : vector<1x250xf32> to vector<8x250xf32>
    %5 = arith.addf %2, %4 : vector<8x250xf32>
    %cst_5 = arith.constant 0.000000e+00 : f32
    %6 = vector.broadcast %cst_5 : f32 to vector<8x250xf32>
    %7 = arith.maximumf %5, %6 : vector<8x250xf32>
    %c0_6 = arith.constant 0 : index
    %c0_7 = arith.constant 0 : index
    %8 = vector.load %arg4[%c0_6, %c0_7] : memref<8x250xf32, #tpu.memory_space<vmem>>, vector<8x250xf32>
    tpu.vector_store %arg4[%c0_6, %c0_7], %7 {strides = array<i32>} : memref<8x250xf32, #tpu.memory_space<vmem>>, vector<8x250xf32>,
    return
  }
  func.func @transform_0(%arg0: i32) -> (i32, i32) {
    %c0_i32 = arith.constant 0 : i32
    %c0_i32_0 = arith.constant 0 : i32
    return %arg0, %c0_i32 : i32, i32
  }
  func.func @transform_1(%arg0: i32) -> (i32, i32) {
    %c0_i32 = arith.constant 0 : i32
    %c0_i32_0 = arith.constant 0 : i32
    %c0_i32_1 = arith.constant 0 : i32
    return %c0_i32, %c0_i32_0 : i32, i32
  }
  func.func @transform_2(%arg0: i32) -> (i32, i32) {
    %c0_i32 = arith.constant 0 : i32
    %c0_i32_0 = arith.constant 0 : i32
    %c0_i32_1 = arith.constant 0 : i32
    return %c0_i32, %c0_i32_0 : i32, i32
  }
  func.func @transform_3(%arg0: i32) -> (i32, i32) {
    %c0_i32 = arith.constant 0 : i32
    %c0_i32_0 = arith.constant 0 : i32
    return %arg0, %c0_i32 : i32, i32
  }
}

</mosaic_0001>

<llo_original>
// kernel: smnn_forward.1
$region0: #{smnn_forward.1}
  #allocation0 [shape = 'u32[]', space=smem, size = 0x4, offset = 0x4, fixed_abs, tag = 'smem constant byte address 0x4 - core index']
  #allocation1 [shape = 'u32[72,128]{1,0:T(1,128)}', space=vmem, size = 0x9000, scoped, tag = 'internal scratch']
  %s0 = inlined_call_operand.hbm [shape: f32[8,200], index: 0, kind: input, shape index: {}]
  %s1 = inlined_call_operand.hbm [shape: f32[200,250], index: 1, kind: input, shape index: {}]
  %s2 = inlined_call_operand.vmem [shape: f32[1,250], index: 2, kind: input, shape index: {}]
  %s3 = inlined_call_operand.hbm [shape: f32[8,250], index: 3, kind: output, shape index: {}]
  %s4 = sld [smem:[#allocation0]]
  $region30: #{smnn_forward.1} parent=0
    _
  %s6 = ssub.s32 1, %s4
  %s7 = scalar_select 0, %s6, %s4
  $region1: #{smnn_forward.1} parent=0
    #allocation2 [shape = 'u8[8192]{0}', space=vmem, size = 0x2000, scoped, tag = 'input window, operand 0, single buffered']
    #allocation3 [shape = 's32[1]{0}', space=sflag, size = 0x4, scoped, tag = 'scoped memory for smnn_forward.1']
    #allocation4 [shape = 's32[1]{0}', space=sflag, size = 0x4, scoped, tag = 'scoped memory for smnn_forward.1']
    #allocation5 [shape = 'u8[204800]{0}', space=vmem, size = 0x32000, scoped, tag = 'input window, operand 1, single buffered']
    #allocation6 [shape = 's32[1]{0}', space=sflag, size = 0x4, scoped, tag = 'scoped memory for smnn_forward.1']
    #allocation7 [shape = 'u8[8192]{0}', space=vmem, size = 0x2000, scoped, tag = 'output window, operand 0, single buffered']
    %8 = vsyncpa [#allocation3], 0
    %9 = vsyncpa [#allocation6], 0
    %10 = vsyncpa [#allocation4], 0
    // Predicated region
    $region2: #{smnn_forward.1} parent=1 // pred_check
      _
    $region3: #{smnn_forward.1} parent=1 // pred_check_branch
      %12 = sbr.rel (0) target = $region5
    $region4: #{smnn_forward.1} parent=1 // pred_region
      %14 = vsyncadd [#allocation3], 0
      %s16 = sshll.u32 %s0, 4
      %s17 = int_to_ptr.hbm [resolvable:$true] %s16
      %s18 = sshll.u32 [#allocation2], 4
      %s19 = int_to_ptr.vmem [resolvable:$true] %s18
      %21 = dma.hbm_to_vmem [thread:$0]  %s17, 256, %s19, [#allocation3]
    $region5: #{smnn_forward.1} parent=1 // pred_fallthru
      _
    // Predicated region
    $region6: #{smnn_forward.1} parent=1 // pred_check
      _
    $region7: #{smnn_forward.1} parent=1 // pred_check_branch
      %23 = sbr.rel (0) target = $region9
    $region8: #{smnn_forward.1} parent=1 // pred_region
      %25 = vsyncadd [#allocation6], 0
      %s26 = sshll.u32 %s1, 4
      %s27 = int_to_ptr.hbm [resolvable:$true] %s26
      %s28 = sshll.u32 [#allocation5], 4
      %s29 = int_to_ptr.vmem [resolvable:$true] %s28
      %34 = dma.hbm_to_vmem [thread:$0]  %s27, 6400, %s29, [#allocation6], 256, 256, 16
    $region9: #{smnn_forward.1} parent=1 // pred_fallthru
      _
    // Predicated region
    $region10: #{smnn_forward.1} parent=1 // pred_check
      _
    $region11: #{smnn_forward.1} parent=1 // pred_check_branch
      %36 = sbr.rel (0) target = $region13
    $region12: #{smnn_forward.1} parent=1 // pred_region
      _
    $region13: #{smnn_forward.1} parent=1 // pred_fallthru
      _
    // Predicated region
    $region14: #{smnn_forward.1} parent=1 // pred_check
      _
    $region15: #{smnn_forward.1} parent=1 // pred_check_branch
      %38 = sbr.rel (0) target = $region17
    $region16: #{smnn_forward.1} parent=1 // pred_region
      %40 = dma.done [#allocation3], 256
    $region17: #{smnn_forward.1} parent=1 // pred_fallthru
      _
    // Predicated region
    $region18: #{smnn_forward.1} parent=1 // pred_check
      _
    $region19: #{smnn_forward.1} parent=1 // pred_check_branch
      %42 = sbr.rel (0) target = $region21
    $region20: #{smnn_forward.1} parent=1 // pred_region
      %44 = dma.done [#allocation6], 6400
    $region21: #{smnn_forward.1} parent=1 // pred_fallthru
      _
    %v45 = vld [vmem:[#allocation2] sm:$0xff]
    %v46 = vld [vmem:[#allocation2 + $0x8] sm:$0xff]
    %v47 = vld [vmem:[#allocation5] sm:$0xff]
    %v48 = vld [vmem:[#allocation5 + $0x8] sm:$0xff]
    %v49 = vld [vmem:[#allocation5 + $0x10] sm:$0xff]
    %v50 = vld [vmem:[#allocation5 + $0x18] sm:$0xff]
    %v51 = vld [vmem:[#allocation5 + $0x20] sm:$0xff]
    %v52 = vld [vmem:[#allocation5 + $0x28] sm:$0xff]
    %v53 = vld [vmem:[#allocation5 + $0x30] sm:$0xff]
    %v54 = vld [vmem:[#allocation5 + $0x38] sm:$0xff]
    %v55 = vld [vmem:[#allocation5 + $0x40] sm:$0xff]
    %v56 = vld [vmem:[#allocation5 + $0x48] sm:$0xff]
    %v57 = vld [vmem:[#allocation5 + $0x50] sm:$0xff]
    %v58 = vld [vmem:[#allocation5 + $0x58] sm:$0xff]
    %v59 = vld [vmem:[#allocation5 + $0x60] sm:$0xff]
    %v60 = vld [vmem:[#allocation5 + $0x68] sm:$0xff]
    %v61 = vld [vmem:[#allocation5 + $0x70] sm:$0xff]
    %v62 = vld [vmem:[#allocation5 + $0x78] sm:$0xff]
    %v63 = vld [vmem:[#allocation5 + $0x80] sm:$0xff]
    %v64 = vld [vmem:[#allocation5 + $0x88] sm:$0xff]
    %v65 = vld [vmem:[#allocation5 + $0x90] sm:$0xff]
    %v66 = vld [vmem:[#allocation5 + $0x98] sm:$0xff]
    %v67 = vld [vmem:[#allocation5 + $0xa0] sm:$0xff]
    %v68 = vld [vmem:[#allocation5 + $0xa8] sm:$0xff]
    %v69 = vld [vmem:[#allocation5 + $0xb0] sm:$0xff]
    %v70 = vld [vmem:[#allocation5 + $0xb8] sm:$0xff]
    %v71 = vld [vmem:[#allocation5 + $0xc0] sm:$0xff]
    %v72 = vld [vmem:[#allocation5 + $0xc8] sm:$0xff]
    %v73 = vld [vmem:[#allocation5 + $0xd0] sm:$0xff]
    %v74 = vld [vmem:[#allocation5 + $0xd8] sm:$0xff]
    %v75 = vld [vmem:[#allocation5 + $0xe0] sm:$0xff]
    %v76 = vld [vmem:[#allocation5 + $0xe8] sm:$0xff]
    %v77 = vld [vmem:[#allocation5 + $0xf0] sm:$0xff]
    %v78 = vld [vmem:[#allocation5 + $0xf8] sm:$0xff]
    %v79 = vld [vmem:[#allocation5 + $0x100] sm:$0xff]
    %v80 = vld [vmem:[#allocation5 + $0x108] sm:$0xff]
    %v81 = vld [vmem:[#allocation5 + $0x110] sm:$0xff]
    %v82 = vld [vmem:[#allocation5 + $0x118] sm:$0xff]
    %v83 = vld [vmem:[#allocation5 + $0x120] sm:$0xff]
    %v84 = vld [vmem:[#allocation5 + $0x128] sm:$0xff]
    %v85 = vld [vmem:[#allocation5 + $0x130] sm:$0xff]
    %v86 = vld [vmem:[#allocation5 + $0x138] sm:$0xff]
    %v87 = vld [vmem:[#allocation5 + $0x140] sm:$0xff]
    %v88 = vld [vmem:[#allocation5 + $0x148] sm:$0xff]
    %v89 = vld [vmem:[#allocation5 + $0x150] sm:$0xff]
    %v90 = vld [vmem:[#allocation5 + $0x158] sm:$0xff]
    %v91 = vld [vmem:[#allocation5 + $0x160] sm:$0xff]
    %v92 = vld [vmem:[#allocation5 + $0x168] sm:$0xff]
    %v93 = vld [vmem:[#allocation5 + $0x170] sm:$0xff]
    %v94 = vld [vmem:[#allocation5 + $0x178] sm:$0xff]
    %v95 = vld [vmem:[#allocation5 + $0x180] sm:$0xff]
    %v96 = vld [vmem:[#allocation5 + $0x188] sm:$0xff]
    %v97 = vld [vmem:[%s2] sm:$0x3]
    %v99 = vperm.slane %v97, 0
    %v100 = vperm.slane %v97, 1
    %vm103 = vcmask 588800
    %v105 = vsel %vm103, %v46, 0
    %107 = vmatpush.msra.mxu0 %v77
    %108 = vmatpush.msra.mxu0 %v75
    %109 = vmatpush.msra.mxu0 %v73
    %110 = vmatpush.msra.mxu0 %v71
    %111 = vmatpush.msra.mxu0 %v69
    %112 = vmatpush.msra.mxu0 %v67
    %113 = vmatpush.msra.mxu0 %v65
    %114 = vmatpush.msra.mxu0 %v63
    %115 = vmatpush.msra.mxu0 %v61
    %116 = vmatpush.msra.mxu0 %v59
    %117 = vmatpush.msra.mxu0 %v57
    %118 = vmatpush.msra.mxu0 %v55
    %119 = vmatpush.msra.mxu0 %v53
    %120 = vmatpush.msra.mxu0 %v51
    %121 = vmatpush.msra.mxu0 %v49
    %122 = vmatpush.msra.mxu0 %v47
    %123 = vmatmul.f32.gmra.mxu0 %v45
    %v124 = vpop.f32.mrf.mxu0
    %v125 = vadd.f32 %v99, %v124
    %126 = vdwg.mxu0
    %127 = vmatpush.msra.mxu0 0.0
    %128 = vmatpush.msra.mxu0 0.0
    %129 = vmatpush.msra.mxu0 0.0
    %130 = vmatpush.msra.mxu0 0.0
    %131 = vmatpush.msra.mxu0 0.0
    %132 = vmatpush.msra.mxu0 0.0
    %133 = vmatpush.msra.mxu0 0.0
    %134 = vmatpush.msra.mxu0 %v95
    %135 = vmatpush.msra.mxu0 %v93
    %136 = vmatpush.msra.mxu0 %v91
    %137 = vmatpush.msra.mxu0 %v89
    %138 = vmatpush.msra.mxu0 %v87
    %139 = vmatpush.msra.mxu0 %v85
    %140 = vmatpush.msra.mxu0 %v83
    %141 = vmatpush.msra.mxu0 %v81
    %142 = vmatpush.msra.mxu0 %v79
    %143 = vmatmul.f32.gmra.mxu0 %v105
    %v144 = vpop.f32.mrf.mxu0
    %v145 = vadd.f32 %v125, %v144
    %146 = vdwg.mxu0
    %147 = vmatpush.msra.mxu0 %v78
    %148 = vmatpush.msra.mxu0 %v76
    %149 = vmatpush.msra.mxu0 %v74
    %150 = vmatpush.msra.mxu0 %v72
    %151 = vmatpush.msra.mxu0 %v70
    %152 = vmatpush.msra.mxu0 %v68
    %153 = vmatpush.msra.mxu0 %v66
    %154 = vmatpush.msra.mxu0 %v64
    %155 = vmatpush.msra.mxu0 %v62
    %156 = vmatpush.msra.mxu0 %v60
    %157 = vmatpush.msra.mxu0 %v58
    %158 = vmatpush.msra.mxu0 %v56
    %159 = vmatpush.msra.mxu0 %v54
    %160 = vmatpush.msra.mxu0 %v52
    %161 = vmatpush.msra.mxu0 %v50
    %162 = vmatpush.msra.mxu0 %v48
    %163 = vmatmul.f32.gmra.mxu0 %v45
    %v164 = vpop.f32.mrf.mxu0
    %v165 = vadd.f32 %v100, %v164
    %166 = vdwg.mxu0
    %167 = vmatpush.msra.mxu0 0.0
    %168 = vmatpush.msra.mxu0 0.0
    %169 = vmatpush.msra.mxu0 0.0
    %170 = vmatpush.msra.mxu0 0.0
    %171 = vmatpush.msra.mxu0 0.0
    %172 = vmatpush.msra.mxu0 0.0
    %173 = vmatpush.msra.mxu0 0.0
    %174 = vmatpush.msra.mxu0 %v96
    %175 = vmatpush.msra.mxu0 %v94
    %176 = vmatpush.msra.mxu0 %v92
    %177 = vmatpush.msra.mxu0 %v90
    %178 = vmatpush.msra.mxu0 %v88
    %179 = vmatpush.msra.mxu0 %v86
    %180 = vmatpush.msra.mxu0 %v84
    %181 = vmatpush.msra.mxu0 %v82
    %182 = vmatpush.msra.mxu0 %v80
    %183 = vmatmul.f32.gmra.mxu0 %v105
    %v184 = vpop.f32.mrf.mxu0
    %v185 = vadd.f32 %v165, %v184
    %186 = vdwg.mxu0
    %v187 = vmax.f32 %v145, 0.0
    %v188 = vmax.f32 %v185, 0.0
    %189 = vst [vmem:[#allocation7] sm:$0xff] %v187
    %vm190 = vcmask 998400
    %191 = vst.msk [vmem:[#allocation7 + $0x8] sm:$0xff] %vm190, %v188
    // Predicated region
    $region22: #{smnn_forward.1} parent=1 // pred_check
      _
    $region23: #{smnn_forward.1} parent=1 // pred_check_branch
      %193 = sbr.rel (0) target = $region25
    $region24: #{smnn_forward.1} parent=1 // pred_region
      %195 = vsyncadd [#allocation4], 0
      %s197 = sshll.u32 [#allocation7], 4
      %s198 = int_to_ptr.vmem [resolvable:$true] %s197
      %s199 = sshll.u32 %s3, 4
      %s200 = int_to_ptr.hbm [resolvable:$true] %s199
      %202 = dma.vmem_to_hbm [thread:$0]  %s198, 256, %s200, [#allocation4]
    $region25: #{smnn_forward.1} parent=1 // pred_fallthru
      _
    // Predicated region
    $region26: #{smnn_forward.1} parent=1 // pred_check
      _
    $region27: #{smnn_forward.1} parent=1 // pred_check_branch
      %204 = sbr.rel (0) target = $region29
    $region28: #{smnn_forward.1} parent=1 // pred_region
      %206 = dma.done [#allocation4], 256
    $region29: #{smnn_forward.1} parent=1 // pred_fallthru
      _
    %207 = vsyncpa [#allocation3], 1
    %208 = vsyncpa [#allocation6], 1
    %209 = vsyncpa [#allocation4], 1

</llo_original>
